<compile_context>
chip_gen: v6e
topology: v6e:2x2x1
jax: 0.10.0
libtpu: 0.0.40
codegen_flags: <defaults>
</compile_context>

<pallas_src>
import jax
import jax.numpy as jnp
import numpy as np
from jax.experimental import pallas as pl
from jax.experimental.pallas import tpu as pltpu

LN_EPS = 1e-5  # PyTorch nn.LayerNorm default eps


def _round_up(n, m):
    return ((n + m - 1) // m) * m


def _tpu_vmem_budget():
    """Usable per-core VMEM budget (bytes): ~75% of physical capacity, v7x-safe fallback."""
    try:
        cap = int(pltpu.get_tpu_info().vmem_capacity_bytes)
    except Exception:
        cap = 64 << 20  # conservative default = v7x per-TensorCore capacity
    return max((cap * 3) // 4, 16 << 20)


def _param_vmem_bytes(C, P):
    """Padded VMEM footprint of the small MLP / conv_mask params (f32)."""
    f32 = 4
    return f32 * (
        _round_up(1, 8) * _round_up(C, 128)        # conv_mask weight (1, C)
        + _round_up(1, 8) * 128                    # conv_mask bias (1, 1)
        + _round_up(P, 8) * _round_up(C, 128)      # W1 (P, C)
        + _round_up(C, 8) * _round_up(P, 128)      # W2 (C, P)
        + 3 * _round_up(P, 8) * 128                # b1, gamma, beta  ((P,1) pads to (P,128))
        + _round_up(C, 8) * 128)                   # b2 (C, 1)


# ----------------------------------------------------------------------------
# Fused single-pass kernel: pooling + MLP + residual add from one VMEM slab.
# ----------------------------------------------------------------------------
def gcb_fused_kernel(x_ref, wm_ref, bm_ref, w1_ref, b1_ref, g_ref, beta_ref,
                     w2_ref, b2_ref, out_ref):
    """out = x + channel_add_conv(softmax_pool(x)) for one batch slab.

    x_ref, out_ref : (1, C, HW)
    wm_ref (1, C), bm_ref (1, 1), w1_ref (P, C), b1_ref (P, 1),
    g_ref / beta_ref (P, 1), w2_ref (C, P), b2_ref (C, 1)
    """
    # conv_mask 1x1: logits over the whole spatial extent, (1, C) @ (C, HW) -> (1, HW)
    logits = (jnp.dot(wm_ref[...], x_ref[0], preferred_element_type=jnp.float32)
              + bm_ref[...])
    m = jnp.max(logits, axis=-1, keepdims=True)
    e = jnp.exp(logits - m)                                    # (1, HW) unnormalized softmax
    z = jnp.sum(e, axis=-1, keepdims=True)                     # (1, 1)

    # softmax-weighted pooling: VPU broadcast-multiply + lane reduce (no XLU transpose).
    s = jnp.sum(x_ref[0] * e, axis=-1, keepdims=True)          # (C, 1)
    context = s / z                                            # exact divide

    # channel_add_conv: 1x1 conv -> LayerNorm([P,1,1]) -> ReLU -> 1x1 conv
    h = jnp.dot(w1_ref[...], context, preferred_element_type=jnp.float32) + b1_ref[...]
    mu = jnp.mean(h, keepdims=True)
    var = jnp.mean((h - mu) ** 2, keepdims=True)               # biased variance (PyTorch LN)
    hn = (h - mu) / jnp.sqrt(var + LN_EPS) * g_ref[...] + beta_ref[...]
    hn = jnp.maximum(hn, 0.0)                                  # ReLU
    term = jnp.dot(w2_ref[...], hn, preferred_element_type=jnp.float32) + b2_ref[...]  # (C, 1)

    out_ref[0] = x_ref[0] + term                               # broadcast add over HW


# ----------------------------------------------------------------------------
# Two-pass fallback: online-softmax pooling kernel + JAX MLP + broadcast add.
# ----------------------------------------------------------------------------
def gcb_pool_kernel(x_ref, wm_ref, bm_ref, ctx_ref, m_scr, z_scr, s_scr):
    """Pass 1: online softmax pooling over spatial tiles. Grid = (B, HW // T).

    x_ref   : (1, C, T) current spatial tile
    ctx_ref : (1, C, 1) pooled context (written at the last spatial tile)
    m_scr/z_scr : (1, 1) running softmax max / normalizer
    s_scr       : (C, 1) running unnormalized weighted sum
    """
    t = pl.program_id(1)

    @pl.when(t == 0)
    def _init():
        m_scr[...] = jnp.full_like(m_scr, -jnp.inf)
        z_scr[...] = jnp.zeros_like(z_scr)
        s_scr[...] = jnp.zeros_like(s_scr)

    x = x_ref[0]                                               # (C, T)
    logits = (jnp.dot(wm_ref[...], x, preferred_element_type=jnp.float32)
              + bm_ref[...])                                   # (1, T)

    m_old = m_scr[...]
    m_new = jnp.maximum(m_old, jnp.max(logits, axis=-1, keepdims=True))
    alpha = jnp.exp(m_old - m_new)                             # == 0 on the first tile
    e = jnp.exp(logits - m_new)                                # (1, T)
    z_scr[...] = alpha * z_scr[...] + jnp.sum(e, axis=-1, keepdims=True)
    s_scr[...] = alpha * s_scr[...] + jnp.sum(x * e, axis=-1, keepdims=True)  # (C, 1)
    m_scr[...] = m_new

    @pl.when(t == pl.num_programs(1) - 1)
    def _finalize():
        ctx_ref[0] = s_scr[...] / z_scr[...]


def gcb_add_kernel(x_ref, term_ref, out_ref):
    """Pass 2: out = x + channel_add term, broadcast over the spatial tile."""
    out_ref[0] = x_ref[0] + term_ref[0]


def _channel_mlp(context, params):
    """Plain-JAX channel_add MLP (hoisted out of the streaming kernel): (B,C) -> (B,C)."""
    _, _, w1, b1, g, beta, w2, b2 = params
    h = context @ w1.T + b1[:, 0]
    mu = jnp.mean(h, axis=-1, keepdims=True)
    var = jnp.mean((h - mu) ** 2, axis=-1, keepdims=True)
    hn = (h - mu) / jnp.sqrt(var + LN_EPS) * g[:, 0] + beta[:, 0]
    hn = jnp.maximum(hn, 0.0)
    return hn @ w2.T + b2[:, 0]


# ----------------------------------------------------------------------------
# Tiling / budgeting helpers.
# ----------------------------------------------------------------------------
def _fused_est_bytes(C, HW, P):
    """Fused working set: double-buffered in + out slabs, ~2 slab-sized compute
    temporaries (x*e product / spilled slab value), once-resident params, margin."""
    slab = _round_up(C, 8) * _round_up(HW, 128) * 4
    return 6 * slab + _param_vmem_bytes(C, P) + (2 << 20)


def _pick_spatial_tile(C, HW, budget):
    """Largest 128-multiple lane tile dividing HW whose padded (C, T) f32 block fits."""
    cpad = _round_up(C, 8)
    block_budget = min(14 << 20, max(budget // 6, 1 << 20))
    smallest_div = None
    for t in (4096, 2048, 1024, 512, 256, 128):
        if HW % t == 0:
            smallest_div = t
            if cpad * t * 4 <= block_budget:
                return t
    # TODO(synk): HW with no 128-multiple divisor streams as one full-HW block; for very
    # large irregular HW this could still exceed the VMEM budget (pad/mask path omitted).
    return smallest_div if smallest_div is not None else HW


def _two_pass_vmem_limit(C, P, T, budget):
    cpad = _round_up(C, 8)
    x_blk = cpad * _round_up(T, 128) * 4
    ctx_blk = cpad * 128 * 4
    scratch = (cpad * 128 + 2 * 8 * 128) * 4
    # Pass 2 working set (x in + out, both double-buffered) dominates Pass 1's.
    est = 4 * x_blk + 2 * ctx_blk + _param_vmem_bytes(C, P) + scratch + (2 << 20)
    return int(min(max(est, 16 << 20), budget))


# ----------------------------------------------------------------------------
# Public wrapper.
# ----------------------------------------------------------------------------
def global_context_block(x, params, *, force_two_pass=False, spatial_tile=None):
    """x: (B, C, H, W) float32 NCHW. Returns (B, C, H, W)."""
    wm, bm, w1, b1, g, beta, w2, b2 = params
    B, C, H, W = x.shape
    HW = H * W
    P = w1.shape[0]
    x2 = x.reshape(B, C, HW).astype(jnp.float32)
    budget = _tpu_vmem_budget()

    fused_est = _fused_est_bytes(C, HW, P)
    if (fused_est <= budget) and not force_two_pass:
        out = _fused_call(x2, params, fused_est, budget)
    else:
        out = _two_pass_call(x2, params, budget, spatial_tile)
    return out.reshape(B, C, H, W)


def _fused_call(x2, params, est, budget):
    wm, bm, w1, b1, g, beta, w2, b2 = params
    B, C, HW = x2.shape
    P = w1.shape[0]

    def const_spec(shape):
        return pl.BlockSpec(shape, lambda b: (0,) * len(shape))

    # NOTE: input_output_aliases={0: 0} would save an HBM output allocation when the
    # caller allows in-place semantics on x; left off to keep value semantics.
    return pl.pallas_call(
        gcb_fused_kernel,
        out_shape=jax.ShapeDtypeStruct((B, C, HW), jnp.float32),
        grid_spec=pltpu.PrefetchScalarGridSpec(
            num_scalar_prefetch=0,
            grid=(B,),
            in_specs=[
                pl.BlockSpec((1, C, HW), lambda b: (b, 0, 0)),   # x slab
                const_spec((1, C)),    # conv_mask weight
                const_spec((1, 1)),    # conv_mask bias
                const_spec((P, C)),    # W1
                const_spec((P, 1)),    # b1
                const_spec((P, 1)),    # LN gamma
                const_spec((P, 1)),    # LN beta
                const_spec((C, P)),    # W2
                const_spec((C, 1)),    # b2
            ],
            out_specs=pl.BlockSpec((1, C, HW), lambda b: (b, 0, 0)),
        ),
        compiler_params=pltpu.CompilerParams(
            dimension_semantics=("parallel",),
            vmem_limit_bytes=int(min(max(est, 16 << 20), budget))),
    )(x2, wm, bm, w1, b1, g, beta, w2, b2)


def _two_pass_call(x2, params, budget, spatial_tile):
    wm, bm, w1, b1, g, beta, w2, b2 = params
    B, C, HW = x2.shape
    P = w1.shape[0]
    T = spatial_tile if spatial_tile is not None else _pick_spatial_tile(C, HW, budget)
    assert HW % T == 0, "spatial tile must divide H*W"
    nT = HW // T
    vmem_limit = _two_pass_vmem_limit(C, P, T, budget)

    # --- Pass 1: pooled context (B, C, 1); the tiny channel MLP is hoisted to JAX. ---
    ctx = pl.pallas_call(
        gcb_pool_kernel,
        out_shape=jax.ShapeDtypeStruct((B, C, 1), jnp.float32),
        grid_spec=pltpu.PrefetchScalarGridSpec(
            num_scalar_prefetch=0,
            grid=(B, nT),
            in_specs=[
                pl.BlockSpec((1, C, T), lambda b, t: (b, 0, t)),   # x spatial tile
                pl.BlockSpec((1, C), lambda b, t: (0, 0)),         # conv_mask weight
                pl.BlockSpec((1, 1), lambda b, t: (0, 0)),         # conv_mask bias
            ],
            out_specs=pl.BlockSpec((1, C, 1), lambda b, t: (b, 0, 0)),
            scratch_shapes=[
                pltpu.VMEM((1, 1), jnp.float32),   # running max
                pltpu.VMEM((1, 1), jnp.float32),   # running normalizer Z
                pltpu.VMEM((C, 1), jnp.float32),   # running unnormalized weighted sum
            ],
        ),
        compiler_params=pltpu.CompilerParams(
            dimension_semantics=("parallel", "arbitrary"),
            vmem_limit_bytes=vmem_limit),
    )(x2, wm, bm)

    term = _channel_mlp(ctx[:, :, 0], params)[:, :, None]       # (B, C, 1)

    # --- Pass 2: out = x + term (lane-dense output, fully parallel grid). ---
    out = pl.pallas_call(
        gcb_add_kernel,
        out_shape=jax.ShapeDtypeStruct((B, C, HW), jnp.float32),
        grid_spec=pltpu.PrefetchScalarGridSpec(
            num_scalar_prefetch=0,
            grid=(B, nT),
            in_specs=[
                pl.BlockSpec((1, C, T), lambda b, t: (b, 0, t)),
                pl.BlockSpec((1, C, 1), lambda b, t: (b, 0, 0)),
            ],
            out_specs=pl.BlockSpec((1, C, T), lambda b, t: (b, 0, t)),
        ),
        compiler_params=pltpu.CompilerParams(
            dimension_semantics=("parallel", "parallel"),
            vmem_limit_bytes=vmem_limit),
    )(x2, term)
    return out


# ----------------------------------------------------------------------------
# Pure-JAX reference + parameter construction + self-test.
# ----------------------------------------------------------------------------
def reference(x, params):
    """Pure-JAX reference matching the PyTorch forward."""
    wm, bm, w1, b1, g, beta, w2, b2 = params
    B, C, H, W = x.shape
    HW = H * W
    xf = x.reshape(B, C, HW)
    logits = jnp.einsum('c,bcs->bs', wm[0], xf) + bm[0, 0]      # conv_mask 1x1
    p = jax.nn.softmax(logits, axis=-1)
    context = jnp.einsum('bcs,bs->bc', xf, p)                   # (B, C)
    h = context @ w1.T + b1[:, 0]                               # (B, P)
    mu = jnp.mean(h, axis=-1, keepdims=True)
    var = jnp.mean((h - mu) ** 2, axis=-1, keepdims=True)
    hn = (h - mu) / jnp.sqrt(var + LN_EPS) * g[:, 0] + beta[:, 0]
    hn = jnp.maximum(hn, 0.0)
    term = hn @ w2.T + b2[:, 0]                                 # (B, C)
    return x + term[:, :, None, None]


def make_params(key, inplanes, ratio):
    planes = int(inplanes * ratio)
    ks = jax.random.split(key, 8)
    wm   = 0.1 * jax.random.normal(ks[0], (1, inplanes), jnp.float32)      # conv_mask.weight
    bm   = 0.1 * jax.random.normal(ks[1], (1, 1), jnp.float32)             # conv_mask.bias
    w1   = 0.1 * jax.random.normal(ks[2], (planes, inplanes), jnp.float32)
    b1   = 0.1 * jax.random.normal(ks[3], (planes, 1), jnp.float32)
    g    = 1.0 + 0.1 * jax.random.normal(ks[4], (planes, 1), jnp.float32)  # LN weight
    beta = 0.1 * jax.random.normal(ks[5], (planes, 1), jnp.float32)        # LN bias
    w2   = 0.1 * jax.random.normal(ks[6], (inplanes, planes), jnp.float32)
    b2   = 0.1 * jax.random.normal(ks[7], (inplanes, 1), jnp.float32)
    return (wm, bm, w1, b1, g, beta, w2, b2)


if __name__ == "__main__":
    key = jax.random.PRNGKey(0)
    kx, kp = jax.random.split(key)

    B, C, H, W = 2, 4, 16, 16
    ratio = 0.5                      # planes = 2
    x = jax.random.normal(kx, (B, C, H, W), jnp.float32)
    params = make_params(kp, C, ratio)
    ref = reference(x, params)

    # Default: fused single-pass path (whole (C, HW) slab resident in VMEM).
    out = jax.block_until_ready(global_context_block(x, params))
    np.testing.assert_allclose(np.asarray(out), np.asarray(ref), rtol=1e-5, atol=1e-5)

    # Force the two-pass fallback (online softmax over multiple spatial tiles + JAX MLP).
    out2 = jax.block_until_ready(
        global_context_block(x, params, force_two_pass=True, spatial_tile=128))
    np.testing.assert_allclose(np.asarray(out2), np.asarray(ref), rtol=1e-5, atol=1e-5)

    print("KERNEL_OK")
</pallas_src>

<mosaic_0001>
module attributes {stable_mosaic.version = 11 : i64} {
  func.func @gcb_fused_kernel(%arg0: i32, %arg1: memref<1x4x256xf32, #tpu.memory_space<vmem>>, %arg2: memref<1x4xf32, #tpu.memory_space<vmem>>, %arg3: memref<1x1xf32, #tpu.memory_space<vmem>>, %arg4: memref<2x4xf32, #tpu.memory_space<vmem>>, %arg5: memref<2x1xf32, #tpu.memory_space<vmem>>, %arg6: memref<2x1xf32, #tpu.memory_space<vmem>>, %arg7: memref<2x1xf32, #tpu.memory_space<vmem>>, %arg8: memref<4x2xf32, #tpu.memory_space<vmem>>, %arg9: memref<4x1xf32, #tpu.memory_space<vmem>>, %arg10: memref<1x4x256xf32, #tpu.memory_space<vmem>>) attributes {dimension_semantics = [#tpu.dimension_semantics<parallel>], iteration_bounds = array<i64: 2>, scalar_prefetch = 0 : i64, scratch_operands = 0 : i64, tpu.core_type = #tpu.core_type<tc>, window_params = [{transform_indices = @transform_0, window_bounds = array<i64: 1, 4, 256>}, {pipeline_mode = #tpu.pipeline_mode<synchronous>, transform_indices = @transform_1, window_bounds = array<i64: 1, 4>}, {pipeline_mode = #tpu.pipeline_mode<synchronous>, transform_indices = @transform_2, window_bounds = array<i64: 1, 1>}, {pipeline_mode = #tpu.pipeline_mode<synchronous>, transform_indices = @transform_3, window_bounds = array<i64: 2, 4>}, {pipeline_mode = #tpu.pipeline_mode<synchronous>, transform_indices = @transform_4, window_bounds = array<i64: 2, 1>}, {pipeline_mode = #tpu.pipeline_mode<synchronous>, transform_indices = @transform_5, window_bounds = array<i64: 2, 1>}, {pipeline_mode = #tpu.pipeline_mode<synchronous>, transform_indices = @transform_6, window_bounds = array<i64: 2, 1>}, {pipeline_mode = #tpu.pipeline_mode<synchronous>, transform_indices = @transform_7, window_bounds = array<i64: 4, 2>}, {pipeline_mode = #tpu.pipeline_mode<synchronous>, transform_indices = @transform_8, window_bounds = array<i64: 4, 1>}, {transform_indices = @transform_9, window_bounds = array<i64: 1, 4, 256>}]} {
    %c0 = arith.constant 0 : index
    %c0_0 = arith.constant 0 : index
    %0 = vector.load %arg2[%c0, %c0_0] : memref<1x4xf32, #tpu.memory_space<vmem>>, vector<1x4xf32>
    %c0_1 = arith.constant 0 : index
    %c0_2 = arith.constant 0 : index
    %c0_3 = arith.constant 0 : index
    %1 = vector.load %arg1[%c0_1, %c0_2, %c0_3] : memref<1x4x256xf32, #tpu.memory_space<vmem>>, vector<1x4x256xf32>
    %2 = vector.shape_cast %1 : vector<1x4x256xf32> to vector<4x256xf32>
    %cst = arith.constant dense<0.000000e+00> : vector<1x256xf32>
    %3 = tpu.matmul %0, %2, %cst {dimension_numbers = #tpu.dot_dimension_numbers<[1], [0], [0], [1], [0, 0, 1, 1], [], []>} : vector<1x4xf32>, vector<4x256xf32>, vector<1x256xf32> -> vector<1x256xf32>
    %c0_4 = arith.constant 0 : index
    %c0_5 = arith.constant 0 : index
    %4 = vector.load %arg3[%c0_4, %c0_5] : memref<1x1xf32, #tpu.memory_space<vmem>>, vector<1x1xf32>
    %5 = vector.broadcast %4 : vector<1x1xf32> to vector<1x256xf32>
    %6 = arith.addf %3, %5 : vector<1x256xf32>
    %cst_6 = arith.constant dense<0xFF800000> : vector<1xf32>
    %7 = vector.multi_reduction <maximumf>, %6, %cst_6 [1] : vector<1x256xf32> to vector<1xf32>
    %8 = vector.shape_cast %7 : vector<1xf32> to vector<1x1xf32>
    %9 = vector.broadcast %8 : vector<1x1xf32> to vector<1x256xf32>
    %10 = arith.subf %6, %9 : vector<1x256xf32>
    %11 = math.exp %10 : vector<1x256xf32>
    %cst_7 = arith.constant dense<0.000000e+00> : vector<1xf32>
    %12 = vector.multi_reduction <add>, %11, %cst_7 [1] : vector<1x256xf32> to vector<1xf32>
    %13 = vector.shape_cast %12 : vector<1xf32> to vector<1x1xf32>
    %c0_8 = arith.constant 0 : index
    %c0_9 = arith.constant 0 : index
    %c0_10 = arith.constant 0 : index
    %14 = vector.load %arg1[%c0_8, %c0_9, %c0_10] : memref<1x4x256xf32, #tpu.memory_space<vmem>>, vector<1x4x256xf32>
    %15 = vector.shape_cast %14 : vector<1x4x256xf32> to vector<4x256xf32>
    %16 = vector.broadcast %11 : vector<1x256xf32> to vector<4x256xf32>
    %17 = arith.mulf %15, %16 : vector<4x256xf32>
    %cst_11 = arith.constant dense<0.000000e+00> : vector<4xf32>
    %18 = vector.multi_reduction <add>, %17, %cst_11 [1] : vector<4x256xf32> to vector<4xf32>
    %19 = vector.shape_cast %18 : vector<4xf32> to vector<4x1xf32>
    %20 = vector.broadcast %13 : vector<1x1xf32> to vector<4x1xf32>
    %21 = arith.divf %19, %20 : vector<4x1xf32>
    %c0_12 = arith.constant 0 : index
    %c0_13 = arith.constant 0 : index
    %22 = vector.load %arg4[%c0_12, %c0_13] : memref<2x4xf32, #tpu.memory_space<vmem>>, vector<2x4xf32>
    %cst_14 = arith.constant dense<0.000000e+00> : vector<2x1xf32>
    %23 = tpu.matmul %22, %21, %cst_14 {dimension_numbers = #tpu.dot_dimension_numbers<[1], [0], [0], [1], [0, 0, 1, 1], [], []>} : vector<2x4xf32>, vector<4x1xf32>, vector<2x1xf32> -> vector<2x1xf32>
    %c0_15 = arith.constant 0 : index
    %c0_16 = arith.constant 0 : index
    %24 = vector.load %arg5[%c0_15, %c0_16] : memref<2x1xf32, #tpu.memory_space<vmem>>, vector<2x1xf32>
    %25 = arith.addf %23, %24 : vector<2x1xf32>
    %26 = vector.shape_cast %25 : vector<2x1xf32> to vector<1x2x1xf32>
    %cst_17 = arith.constant dense<0.000000e+00> : vector<1xf32>
    %27 = vector.multi_reduction <add>, %26, %cst_17 [1, 2] : vector<1x2x1xf32> to vector<1xf32>
    %28 = vector.shape_cast %27 : vector<1xf32> to vector<1x1x1xf32>
    %29 = vector.extract %28[0, 0, 0] : f32 from vector<1x1x1xf32>
    %30 = vector.broadcast %29 : f32 to vector<1x1xf32>
    %cst_18 = arith.constant 2.000000e+00 : f32
    %31 = vector.broadcast %cst_18 : f32 to vector<1x1xf32>
    %32 = arith.divf %30, %31 : vector<1x1xf32>
    %33 = vector.broadcast %32 : vector<1x1xf32> to vector<2x1xf32>
    %34 = arith.subf %25, %33 : vector<2x1xf32>
    %35 = arith.mulf %34, %34 : vector<2x1xf32>
    %36 = vector.shape_cast %35 : vector<2x1xf32> to vector<1x2x1xf32>
    %cst_19 = arith.constant dense<0.000000e+00> : vector<1xf32>
    %37 = vector.multi_reduction <add>, %36, %cst_19 [1, 2] : vector<1x2x1xf32> to vector<1xf32>
    %38 = vector.shape_cast %37 : vector<1xf32> to vector<1x1x1xf32>
    %39 = vector.extract %38[0, 0, 0] : f32 from vector<1x1x1xf32>
    %40 = vector.broadcast %39 : f32 to vector<1x1xf32>
    %cst_20 = arith.constant 2.000000e+00 : f32
    %41 = vector.broadcast %cst_20 : f32 to vector<1x1xf32>
    %42 = arith.divf %40, %41 : vector<1x1xf32>
    %43 = vector.broadcast %32 : vector<1x1xf32> to vector<2x1xf32>
    %44 = arith.subf %25, %43 : vector<2x1xf32>
    %cst_21 = arith.constant 9.99999974E-6 : f32
    %45 = vector.broadcast %cst_21 : f32 to vector<1x1xf32>
    %46 = arith.addf %42, %45 : vector<1x1xf32>
    %47 = math.sqrt %46 : vector<1x1xf32>
    %48 = vector.broadcast %47 : vector<1x1xf32> to vector<2x1xf32>
    %49 = arith.divf %44, %48 : vector<2x1xf32>
    %c0_22 = arith.constant 0 : index
    %c0_23 = arith.constant 0 : index
    %50 = vector.load %arg6[%c0_22, %c0_23] : memref<2x1xf32, #tpu.memory_space<vmem>>, vector<2x1xf32>
    %51 = arith.mulf %49, %50 : vector<2x1xf32>
    %c0_24 = arith.constant 0 : index
    %c0_25 = arith.constant 0 : index
    %52 = vector.load %arg7[%c0_24, %c0_25] : memref<2x1xf32, #tpu.memory_space<vmem>>, vector<2x1xf32>
    %53 = arith.addf %51, %52 : vector<2x1xf32>
    %cst_26 = arith.constant 0.000000e+00 : f32
    %54 = vector.broadcast %cst_26 : f32 to vector<2x1xf32>
    %55 = arith.maximumf %53, %54 : vector<2x1xf32>
    %c0_27 = arith.constant 0 : index
    %c0_28 = arith.constant 0 : index
    %56 = vector.load %arg8[%c0_27, %c0_28] : memref<4x2xf32, #tpu.memory_space<vmem>>, vector<4x2xf32>
    %cst_29 = arith.constant dense<0.000000e+00> : vector<4x1xf32>
    %57 = tpu.matmul %56, %55, %cst_29 {dimension_numbers = #tpu.dot_dimension_numbers<[1], [0], [0], [1], [0, 0, 1, 1], [], []>} : vector<4x2xf32>, vector<2x1xf32>, vector<4x1xf32> -> vector<4x1xf32>
    %c0_30 = arith.constant 0 : index
    %c0_31 = arith.constant 0 : index
    %58 = vector.load %arg9[%c0_30, %c0_31] : memref<4x1xf32, #tpu.memory_space<vmem>>, vector<4x1xf32>
    %59 = arith.addf %57, %58 : vector<4x1xf32>
    %c0_32 = arith.constant 0 : index
    %c0_33 = arith.constant 0 : index
    %c0_34 = arith.constant 0 : index
    %60 = vector.load %arg1[%c0_32, %c0_33, %c0_34] : memref<1x4x256xf32, #tpu.memory_space<vmem>>, vector<1x4x256xf32>
    %61 = vector.shape_cast %60 : vector<1x4x256xf32> to vector<4x256xf32>
    %62 = vector.broadcast %59 : vector<4x1xf32> to vector<4x256xf32>
    %63 = arith.addf %61, %62 : vector<4x256xf32>
    %c0_35 = arith.constant 0 : index
    %c0_36 = arith.constant 0 : index
    %c0_37 = arith.constant 0 : index
    %64 = vector.load %arg10[%c0_35, %c0_36, %c0_37] : memref<1x4x256xf32, #tpu.memory_space<vmem>>, vector<1x4x256xf32>
    %65 = vector.shape_cast %64 : vector<1x4x256xf32> to vector<4x256xf32>
    %66 = vector.shape_cast %63 : vector<4x256xf32> to vector<1x4x256xf32>
    tpu.vector_store %arg10[%c0_35, %c0_36, %c0_37], %66 {strides = array<i32>} : memref<1x4x256xf32, #tpu.memory_space<vmem>>, vector<1x4x256xf32>,
    return
  }
  func.func @transform_0(%arg0: i32) -> (i32, i32, i32) {
    %c0_i32 = arith.constant 0 : i32
    %c0_i32_0 = arith.constant 0 : i32
    %c0_i32_1 = arith.constant 0 : i32
    return %arg0, %c0_i32, %c0_i32_0 : i32, i32, i32
  }
  func.func @transform_1(%arg0: i32) -> (i32, i32) {
    %c0_i32 = arith.constant 0 : i32
    %c0_i32_0 = arith.constant 0 : i32
    %c0_i32_1 = arith.constant 0 : i32
    return %c0_i32, %c0_i32_0 : i32, i32
  }
  func.func @transform_2(%arg0: i32) -> (i32, i32) {
    %c0_i32 = arith.constant 0 : i32
    %c0_i32_0 = arith.constant 0 : i32
    %c0_i32_1 = arith.constant 0 : i32
    return %c0_i32, %c0_i32_0 : i32, i32
  }
  func.func @transform_3(%arg0: i32) -> (i32, i32) {
    %c0_i32 = arith.constant 0 : i32
    %c0_i32_0 = arith.constant 0 : i32
    %c0_i32_1 = arith.constant 0 : i32
    return %c0_i32, %c0_i32_0 : i32, i32
  }
  func.func @transform_4(%arg0: i32) -> (i32, i32) {
    %c0_i32 = arith.constant 0 : i32
    %c0_i32_0 = arith.constant 0 : i32
    %c0_i32_1 = arith.constant 0 : i32
    return %c0_i32, %c0_i32_0 : i32, i32
  }
  func.func @transform_5(%arg0: i32) -> (i32, i32) {
    %c0_i32 = arith.constant 0 : i32
    %c0_i32_0 = arith.constant 0 : i32
    %c0_i32_1 = arith.constant 0 : i32
    return %c0_i32, %c0_i32_0 : i32, i32
  }
  func.func @transform_6(%arg0: i32) -> (i32, i32) {
    %c0_i32 = arith.constant 0 : i32
    %c0_i32_0 = arith.constant 0 : i32
    %c0_i32_1 = arith.constant 0 : i32
    return %c0_i32, %c0_i32_0 : i32, i32
  }
  func.func @transform_7(%arg0: i32) -> (i32, i32) {
    %c0_i32 = arith.constant 0 : i32
    %c0_i32_0 = arith.constant 0 : i32
    %c0_i32_1 = arith.constant 0 : i32
    return %c0_i32, %c0_i32_0 : i32, i32
  }
  func.func @transform_8(%arg0: i32) -> (i32, i32) {
    %c0_i32 = arith.constant 0 : i32
    %c0_i32_0 = arith.constant 0 : i32
    %c0_i32_1 = arith.constant 0 : i32
    return %c0_i32, %c0_i32_0 : i32, i32
  }
  func.func @transform_9(%arg0: i32) -> (i32, i32, i32) {
    %c0_i32 = arith.constant 0 : i32
    %c0_i32_0 = arith.constant 0 : i32
    %c0_i32_1 = arith.constant 0 : i32
    return %arg0, %c0_i32, %c0_i32_0 : i32, i32, i32
  }
}

</mosaic_0001>

<llo_original>
// kernel: tpu_custom_call.1
$region0: #{tpu_custom_call.1}
  #allocation0 [shape = 'u32[]', space=smem, size = 0x4, offset = 0x4, fixed_abs, tag = 'smem constant byte address 0x4 - core index']
  #allocation1 [shape = 'u32[144,128]{1,0:T(1,128)}', space=vmem, size = 0x12000, scoped, tag = 'internal scratch']
  #allocation2 [shape = 'f32[1,1]{1,0:T(1,128)S(1)}', space=vmem, size = 0x200, scoped, tag = 'scoped memory for tpu_custom_call.1']
  %s0 = inlined_call_operand.vmem [shape: f32[2,4,256], index: 0, kind: input, shape index: {}]
  %s1 = inlined_call_operand.hbm [shape: f32[1,4], index: 1, kind: input, shape index: {}]
  %s2 = inlined_call_operand.<no memory space> [shape: f32[1,1], index: 2, kind: input, shape index: {}]
  %s3 = inlined_call_operand.vmem [shape: f32[2,4], index: 3, kind: input, shape index: {}]
  %s4 = inlined_call_operand.vmem [shape: f32[2,1], index: 4, kind: input, shape index: {}]
  %s5 = inlined_call_operand.vmem [shape: f32[2,1], index: 5, kind: input, shape index: {}]
  %s6 = inlined_call_operand.vmem [shape: f32[2,1], index: 6, kind: input, shape index: {}]
  %s7 = inlined_call_operand.vmem [shape: f32[4,2], index: 7, kind: input, shape index: {}]
  %s8 = inlined_call_operand.vmem [shape: f32[4,1], index: 8, kind: input, shape index: {}]
  %s9 = inlined_call_operand.hbm [shape: f32[2,4,256], index: 9, kind: output, shape index: {}]
  %s10 = sld [smem:[#allocation0]]
  $region73: #{tpu_custom_call.1} parent=0
    _
  %s12 = ssub.s32 1, %s10
  %s13 = scalar_select 0, %s12, %s10
  %v14 = vstv %s2
  %15 = vst [vmem:[#allocation2] sm:$0x1] %v14
  $region1: #{tpu_custom_call.1} parent=0
    #allocation3 [shape = 'u8[512]{0}', space=vmem, size = 0x400, scoped, tag = 'input window, operand 1, single buffered']
    #allocation4 [shape = 's32[2]{0}', space=sflag, size = 0x8, scoped, tag = 'scoped memory for tpu_custom_call.1']
    #allocation5 [shape = 's32[2]{0}', space=sflag, size = 0x8, scoped, tag = 'scoped memory for tpu_custom_call.1']
    #allocation6 [shape = 'u8[8192]{0}', space=vmem, size = 0x2000, scoped, tag = 'output window, operand 0']
    %16 = vsyncpa [#allocation4], 0
    %17 = vsyncpa [#allocation5], 0
    %s18 = scalar_lea.sflag [#allocation5], 1
    %19 = vsyncpa %s18, 0
    loop: start=0, step=1, limit=4
    $region2: #{tpu_custom_call.1} parent=1 // loop_pre_header
      _
    $region3: #{tpu_custom_call.1} parent=1 // loop_header
      %s21 = sphi 0, %s25
      %p22 = scmp.ge.s32.totalorder %s21, 4
      %s31 = sphi 0, %s33
      %s34 = sphi 0, %s31
      %s35 = sphi 0, %s34
      %s51 = sphi 0, %s35
      %s55 = sphi 0, %s55
      %s57 = sphi 0, %s55
      %s58 = sphi 0, %s57
      %s72 = sphi 0, %s58
      %s76 = sphi 0, %s76
      %s78 = sphi 0, %s76
      %s79 = sphi 0, %s78
      %s93 = sphi 0, %s79
      %s97 = sphi 0, %s97
      %s99 = sphi 0, %s97
      %s100 = sphi 0, %s99
      %s114 = sphi 0, %s100
      %s118 = sphi 0, %s118
      %s120 = sphi 0, %s118
      %s121 = sphi 0, %s120
      %s135 = sphi 0, %s121
      %s139 = sphi 0, %s139
      %s141 = sphi 0, %s139
      %s142 = sphi 0, %s141
      %s156 = sphi 0, %s142
      %s160 = sphi 0, %s160
      %s162 = sphi 0, %s160
      %s163 = sphi 0, %s162
      %s177 = sphi 0, %s163
      %s181 = sphi 0, %s181
      %s183 = sphi 0, %s181
      %s184 = sphi 0, %s183
      %s198 = sphi 0, %s184
      %s202 = sphi 0, %s202
      %s204 = sphi 0, %s202
      %s205 = sphi 0, %s204
      %s219 = sphi 0, %s205
      %s225 = sphi 0, %s227
      %s228 = sphi 0, %s225
      %s229 = sphi 0, %s228
      %s245 = sphi 0, %s229
    $region4: #{tpu_custom_call.1} parent=1 // loop_header_branch
      %24 = sbr.rel (%p22) target = $region8
    $region5: #{tpu_custom_call.1} parent=1 // loop_body
      %s26 = ssub.s32 %s21, 1
      %s27 = ssub.s32 %s21, 2
      %s28 = sadd.s32 %s21, 1
      %s29 = ssub.s32 %s21, %s28
      %p30 = scmp.eq.s32.totalorder %s29, 0
      %s32 = sadd.s32 %s31, 1
      %s33 = scalar_select %p30, %s31, %s32
      %p36 = pneg %p30
      %p37 = scmp.eq.s32.totalorder %s21, 1
      %p38 = por %p36, %p37
      %p39 = scmp.ne.s32.totalorder %s31, %s34
      %p40 = scmp.eq.s32.totalorder %s21, 0
      %p41 = por %p39, %p40
      %p42 = scmp.ne.s32.totalorder %s31, %s34
      %p43 = scmp.eq.s32.totalorder %s26, 1
      %p44 = por %p42, %p43
      %p45 = scmp.ne.s32.totalorder %s34, %s35
      %p46 = scmp.eq.s32.totalorder %s26, 0
      %p47 = por %p45, %p46
      %p48 = scmp.ne.s32.totalorder %s34, %s35
      %p49 = scmp.eq.s32.totalorder %s27, 1
      %p50 = por %p48, %p49
      %p52 = scmp.ne.s32.totalorder %s35, %s51
      %p53 = scmp.eq.s32.totalorder %s27, 0
      %p54 = por %p52, %p53
      %s56 = sadd.s32 %s55, 1
      %p59 = scmp.eq.s32.totalorder %s21, 1
      %p60 = scmp.ne.s32.totalorder %s55, %s57
      %p61 = scmp.eq.s32.totalorder %s21, 0
      %p62 = por %p60, %p61
      %p63 = scmp.ne.s32.totalorder %s55, %s57
      %p64 = scmp.eq.s32.totalorder %s26, 1
      %p65 = por %p63, %p64
      %p66 = scmp.ne.s32.totalorder %s57, %s58
      %p67 = scmp.eq.s32.totalorder %s26, 0
      %p68 = por %p66, %p67
      %p69 = scmp.ne.s32.totalorder %s57, %s58
      %p70 = scmp.eq.s32.totalorder %s27, 1
      %p71 = por %p69, %p70
      %p73 = scmp.ne.s32.totalorder %s58, %s72
      %p74 = scmp.eq.s32.totalorder %s27, 0
      %p75 = por %p73, %p74
      %s77 = sadd.s32 %s76, 1
      %p80 = scmp.eq.s32.totalorder %s21, 1
      %p81 = scmp.ne.s32.totalorder %s76, %s78
      %p82 = scmp.eq.s32.totalorder %s21, 0
      %p83 = por %p81, %p82
      %p84 = scmp.ne.s32.totalorder %s76, %s78
      %p85 = scmp.eq.s32.totalorder %s26, 1
      %p86 = por %p84, %p85
      %p87 = scmp.ne.s32.totalorder %s78, %s79
      %p88 = scmp.eq.s32.totalorder %s26, 0
      %p89 = por %p87, %p88
      %p90 = scmp.ne.s32.totalorder %s78, %s79
      %p91 = scmp.eq.s32.totalorder %s27, 1
      %p92 = por %p90, %p91
      %p94 = scmp.ne.s32.totalorder %s79, %s93
      %p95 = scmp.eq.s32.totalorder %s27, 0
      %p96 = por %p94, %p95
      %s98 = sadd.s32 %s97, 1
      %p101 = scmp.eq.s32.totalorder %s21, 1
      %p102 = scmp.ne.s32.totalorder %s97, %s99
      %p103 = scmp.eq.s32.totalorder %s21, 0
      %p104 = por %p102, %p103
      %p105 = scmp.ne.s32.totalorder %s97, %s99
      %p106 = scmp.eq.s32.totalorder %s26, 1
      %p107 = por %p105, %p106
      %p108 = scmp.ne.s32.totalorder %s99, %s100
      %p109 = scmp.eq.s32.totalorder %s26, 0
      %p110 = por %p108, %p109
      %p111 = scmp.ne.s32.totalorder %s99, %s100
      %p112 = scmp.eq.s32.totalorder %s27, 1
      %p113 = por %p111, %p112
      %p115 = scmp.ne.s32.totalorder %s100, %s114
      %p116 = scmp.eq.s32.totalorder %s27, 0
      %p117 = por %p115, %p116
      %s119 = sadd.s32 %s118, 1
      %p122 = scmp.eq.s32.totalorder %s21, 1
      %p123 = scmp.ne.s32.totalorder %s118, %s120
      %p124 = scmp.eq.s32.totalorder %s21, 0
      %p125 = por %p123, %p124
      %p126 = scmp.ne.s32.totalorder %s118, %s120
      %p127 = scmp.eq.s32.totalorder %s26, 1
      %p128 = por %p126, %p127
      %p129 = scmp.ne.s32.totalorder %s120, %s121
      %p130 = scmp.eq.s32.totalorder %s26, 0
      %p131 = por %p129, %p130
      %p132 = scmp.ne.s32.totalorder %s120, %s121
      %p133 = scmp.eq.s32.totalorder %s27, 1
      %p134 = por %p132, %p133
      %p136 = scmp.ne.s32.totalorder %s121, %s135
      %p137 = scmp.eq.s32.totalorder %s27, 0
      %p138 = por %p136, %p137
      %s140 = sadd.s32 %s139, 1
      %p143 = scmp.eq.s32.totalorder %s21, 1
      %p144 = scmp.ne.s32.totalorder %s139, %s141
      %p145 = scmp.eq.s32.totalorder %s21, 0
      %p146 = por %p144, %p145
      %p147 = scmp.ne.s32.totalorder %s139, %s141
      %p148 = scmp.eq.s32.totalorder %s26, 1
      %p149 = por %p147, %p148
      %p150 = scmp.ne.s32.totalorder %s141, %s142
      %p151 = scmp.eq.s32.totalorder %s26, 0
      %p152 = por %p150, %p151
      %p153 = scmp.ne.s32.totalorder %s141, %s142
      %p154 = scmp.eq.s32.totalorder %s27, 1
      %p155 = por %p153, %p154
      %p157 = scmp.ne.s32.totalorder %s142, %s156
      %p158 = scmp.eq.s32.totalorder %s27, 0
      %p159 = por %p157, %p158
      %s161 = sadd.s32 %s160, 1
      %p164 = scmp.eq.s32.totalorder %s21, 1
      %p165 = scmp.ne.s32.totalorder %s160, %s162
      %p166 = scmp.eq.s32.totalorder %s21, 0
      %p167 = por %p165, %p166
      %p168 = scmp.ne.s32.totalorder %s160, %s162
      %p169 = scmp.eq.s32.totalorder %s26, 1
      %p170 = por %p168, %p169
      %p171 = scmp.ne.s32.totalorder %s162, %s163
      %p172 = scmp.eq.s32.totalorder %s26, 0
      %p173 = por %p171, %p172
      %p174 = scmp.ne.s32.totalorder %s162, %s163
      %p175 = scmp.eq.s32.totalorder %s27, 1
      %p176 = por %p174, %p175
      %p178 = scmp.ne.s32.totalorder %s163, %s177
      %p179 = scmp.eq.s32.totalorder %s27, 0
      %p180 = por %p178, %p179
      %s182 = sadd.s32 %s181, 1
      %p185 = scmp.eq.s32.totalorder %s21, 1
      %p186 = scmp.ne.s32.totalorder %s181, %s183
      %p187 = scmp.eq.s32.totalorder %s21, 0
      %p188 = por %p186, %p187
      %p189 = scmp.ne.s32.totalorder %s181, %s183
      %p190 = scmp.eq.s32.totalorder %s26, 1
      %p191 = por %p189, %p190
      %p192 = scmp.ne.s32.totalorder %s183, %s184
      %p193 = scmp.eq.s32.totalorder %s26, 0
      %p194 = por %p192, %p193
      %p195 = scmp.ne.s32.totalorder %s183, %s184
      %p196 = scmp.eq.s32.totalorder %s27, 1
      %p197 = por %p195, %p196
      %p199 = scmp.ne.s32.totalorder %s184, %s198
      %p200 = scmp.eq.s32.totalorder %s27, 0
      %p201 = por %p199, %p200
      %s203 = sadd.s32 %s202, 1
      %p206 = scmp.eq.s32.totalorder %s21, 1
      %p207 = scmp.ne.s32.totalorder %s202, %s204
      %p208 = scmp.eq.s32.totalorder %s21, 0
      %p209 = por %p207, %p208
      %p210 = scmp.ne.s32.totalorder %s202, %s204
      %p211 = scmp.eq.s32.totalorder %s26, 1
      %p212 = por %p210, %p211
      %p213 = scmp.ne.s32.totalorder %s204, %s205
      %p214 = scmp.eq.s32.totalorder %s26, 0
      %p215 = por %p213, %p214
      %p216 = scmp.ne.s32.totalorder %s204, %s205
      %p217 = scmp.eq.s32.totalorder %s27, 1
      %p218 = por %p216, %p217
      %p220 = scmp.ne.s32.totalorder %s205, %s219
      %p221 = scmp.eq.s32.totalorder %s27, 0
      %p222 = por %p220, %p221
      %s223 = ssub.s32 %s21, %s28
      %p224 = scmp.eq.s32.totalorder %s223, 0
      %s226 = sadd.s32 %s225, 1
      %s227 = scalar_select %p224, %s225, %s226
      %p230 = pneg %p224
      %p231 = scmp.eq.s32.totalorder %s21, 1
      %p232 = por %p230, %p231
      %p233 = scmp.ne.s32.totalorder %s225, %s228
      %p234 = scmp.eq.s32.totalorder %s21, 0
      %p235 = por %p233, %p234
      %p236 = scmp.ne.s32.totalorder %s225, %s228
      %p237 = scmp.eq.s32.totalorder %s26, 1
      %p238 = por %p236, %p237
      %p239 = scmp.ne.s32.totalorder %s228, %s229
      %p240 = scmp.eq.s32.totalorder %s26, 0
      %p241 = por %p239, %p240
      %p242 = scmp.ne.s32.totalorder %s228, %s229
      %p243 = scmp.eq.s32.totalorder %s27, 1
      %p244 = por %p242, %p243
      %p246 = scmp.ne.s32.totalorder %s229, %s245
      %p247 = scmp.eq.s32.totalorder %s27, 0
      %p248 = por %p246, %p247
      %p249 = scmp.le.s32.totalorder 1, %s21
      %p250 = scmp.lt.s32.totalorder %s21, 3
      %p251 = pnand %p249, %p250
      %p252 = pneg %p251
      // Predicated region
      $region9: #{tpu_custom_call.1} parent=5 // pred_check
        _
      $region10: #{tpu_custom_call.1} parent=5 // pred_check_branch
        %254 = sbr.rel (%p251) target = $region12
      $region11: #{tpu_custom_call.1} parent=5 // pred_region
        %s255 = ssub.s32 %s21, 1
        // Predicated region
        $region13: #{tpu_custom_call.1} parent=11 // pred_check
          %p256 = pneg %p68
        $region14: #{tpu_custom_call.1} parent=11 // pred_check_branch
          %258 = sbr.rel (%p256) target = $region16
        $region15: #{tpu_custom_call.1} parent=11 // pred_region
          %s260 = ssub.s32 16, 16
          %261 = vsyncadd [#allocation4], %s260
          %s263 = sshll.u32 [#allocation3], 4
          %s264 = int_to_ptr.vmem [resolvable:$true] %s263
          %266 = dma.hbm_to_vmem [thread:$0]  %s1, 16, %s264, [#allocation4]
        $region16: #{tpu_custom_call.1} parent=11 // pred_fallthru
          _
        // Predicated region
        $region17: #{tpu_custom_call.1} parent=11 // pred_check
          %p267 = pneg %p89
        $region18: #{tpu_custom_call.1} parent=11 // pred_check_branch
          %269 = sbr.rel (%p267) target = $region20
        $region19: #{tpu_custom_call.1} parent=11 // pred_region
          _
        $region20: #{tpu_custom_call.1} parent=11 // pred_fallthru
          _
        // Predicated region
        $region21: #{tpu_custom_call.1} parent=11 // pred_check
          %p270 = pneg %p110
        $region22: #{tpu_custom_call.1} parent=11 // pred_check_branch
          %272 = sbr.rel (%p270) target = $region24
        $region23: #{tpu_custom_call.1} parent=11 // pred_region
          _
        $region24: #{tpu_custom_call.1} parent=11 // pred_fallthru
          _
        // Predicated region
        $region25: #{tpu_custom_call.1} parent=11 // pred_check
          %p273 = pneg %p131
        $region26: #{tpu_custom_call.1} parent=11 // pred_check_branch
          %275 = sbr.rel (%p273) target = $region28
        $region27: #{tpu_custom_call.1} parent=11 // pred_region
          _
        $region28: #{tpu_custom_call.1} parent=11 // pred_fallthru
          _
        // Predicated region
        $region29: #{tpu_custom_call.1} parent=11 // pred_check
          %p276 = pneg %p152
        $region30: #{tpu_custom_call.1} parent=11 // pred_check_branch
          %278 = sbr.rel (%p276) target = $region32
        $region31: #{tpu_custom_call.1} parent=11 // pred_region
          _
        $region32: #{tpu_custom_call.1} parent=11 // pred_fallthru
          _
        // Predicated region
        $region33: #{tpu_custom_call.1} parent=11 // pred_check
          %p279 = pneg %p173
        $region34: #{tpu_custom_call.1} parent=11 // pred_check_branch
          %281 = sbr.rel (%p279) target = $region36
        $region35: #{tpu_custom_call.1} parent=11 // pred_region
          _
        $region36: #{tpu_custom_call.1} parent=11 // pred_fallthru
          _
        // Predicated region
        $region37: #{tpu_custom_call.1} parent=11 // pred_check
          %p282 = pneg %p194
        $region38: #{tpu_custom_call.1} parent=11 // pred_check_branch
          %284 = sbr.rel (%p282) target = $region40
        $region39: #{tpu_custom_call.1} parent=11 // pred_region
          _
        $region40: #{tpu_custom_call.1} parent=11 // pred_fallthru
          _
        // Predicated region
        $region41: #{tpu_custom_call.1} parent=11 // pred_check
          %p285 = pneg %p215
        $region42: #{tpu_custom_call.1} parent=11 // pred_check_branch
          %287 = sbr.rel (%p285) target = $region44
        $region43: #{tpu_custom_call.1} parent=11 // pred_region
          _
        $region44: #{tpu_custom_call.1} parent=11 // pred_fallthru
          _
      $region12: #{tpu_custom_call.1} parent=5 // pred_fallthru
        _
      %p288 = scmp.lt.s32.totalorder %s21, 2
      // Predicated region
      $region45: #{tpu_custom_call.1} parent=5 // pred_check
        %p289 = pneg %p288
      $region46: #{tpu_custom_call.1} parent=5 // pred_check_branch
        %291 = sbr.rel (%p289) target = $region48
      $region47: #{tpu_custom_call.1} parent=5 // pred_region
        // Predicated region
        $region49: #{tpu_custom_call.1} parent=47 // pred_check
          %p292 = pneg %p41
        $region50: #{tpu_custom_call.1} parent=47 // pred_check_branch
          %294 = sbr.rel (%p292) target = $region52
        $region51: #{tpu_custom_call.1} parent=47 // pred_region
          %p295 = scmp.lt.s32.totalorder %s21, 1
          %s296 = scalar_select %p295, %s21, 1
          %s297 = smul.addr %s296, 2
          %s298 = smul.addr %s297, 4
          %s299 = scalar_lea.vmem %s0, %s298
        $region52: #{tpu_custom_call.1} parent=47 // pred_fallthru
          _
      $region48: #{tpu_custom_call.1} parent=5 // pred_fallthru
        _
      %p300 = scmp.le.s32.totalorder 1, %s21
      %p301 = scmp.lt.s32.totalorder %s21, 3
      %p302 = pnand %p300, %p301
      %p303 = pneg %p302
      // Predicated region
      $region53: #{tpu_custom_call.1} parent=5 // pred_check
        _
      $region54: #{tpu_custom_call.1} parent=5 // pred_check_branch
        %305 = sbr.rel (%p302) target = $region56
      $region55: #{tpu_custom_call.1} parent=5 // pred_region
        %s306 = ssub.s32 %s21, 1
        // Predicated region
        $region57: #{tpu_custom_call.1} parent=55 // pred_check
          %p307 = pneg %p68
        $region58: #{tpu_custom_call.1} parent=55 // pred_check_branch
          %309 = sbr.rel (%p307) target = $region60
        $region59: #{tpu_custom_call.1} parent=55 // pred_region
          %310 = dma.done [#allocation4], 16
        $region60: #{tpu_custom_call.1} parent=55 // pred_fallthru
          _
        %p311 = scmp.lt.s32.totalorder %s26, 1
        %s312 = scalar_select %p311, %s26, 1
        %s313 = smul.addr %s312, 2
        %s314 = smul.addr %s313, 4
        %s315 = scalar_lea.vmem %s0, %s314
        %p316 = pneg %p47
        %p317 = pneg %p44
        %p318 = pneg %p68
        %p319 = pneg %p65
        %p320 = pneg %p89
        %p321 = pneg %p86
        %p322 = pneg %p110
        %p323 = pneg %p107
        %p324 = pneg %p131
        %p325 = pneg %p128
        %p326 = pneg %p152
        %p327 = pneg %p149
        %p328 = pneg %p173
        %p329 = pneg %p170
        %p330 = pneg %p194
        %p331 = pneg %p191
        %p332 = pneg %p215
        %p333 = pneg %p212
        %p334 = pneg %p241
        %p335 = pneg %p238
        %s336 = sand.u32 %s228, 1
        %s337 = scalar_lea.sflag [#allocation5], %s336
        %s338 = sand.u32 %s228, 1
        %s339 = smul.addr %s338, 8
        %s340 = scalar_lea.vmem [#allocation6], %s339
        %p341 = scmp.lt.s32.totalorder %s26, 1
        %s342 = scalar_select %p341, %s26, 1
        %s343 = smul.addr %s342, 2
        %s344 = smul.addr %s343, 4
        %s345 = scalar_lea.vmem %s0, %s344
        %v346 = vld [vmem:[#allocation3] sm:$0x1]
        %v347 = vld [vmem:[%s345] sm:$0xff]
        %v348 = vld [vmem:[#allocation2] sm:$0x1]
        %350 = vset.pattern.permute.xlu0 0
        %351 = vperm.xlu0 %350, %v348
        %v352 = vpop.permute.xlu0 %351
        %v354 = vlaneseq
        %v355 = vshrl.u32 %v354, 7
        %v356 = vsub.s32 0, %v355
        %v357 = vrot.slane %v352, %v356
        %v359 = vcombine.high %v347, %v347
        %vm360 = vcmask 31744
        %v362 = vsel %vm360, %v346, 0
        %vm364 = vcmask 1043456
        %v365 = vsel %vm364, %v347, 0
        %v367 = vsel %vm364, %v359, 0
        %369 = vmatprep.subr.mxu0 0.0
        %370 = vmatpush1.msra.mxu0 0.0
        %371 = vmatprep.subr.mxu0 0.0
        %372 = vmatpush1.msra.mxu0 0.0
        %373 = vmatprep.subr.mxu0 0.0
        %374 = vmatpush1.msra.mxu0 0.0
        %375 = vmatprep.subr.mxu0 0.0
        %376 = vmatpush1.msra.mxu0 0.0
        %377 = vmatprep.subr.mxu0 0.0
        %378 = vmatpush1.msra.mxu0 0.0
        %379 = vmatprep.subr.mxu0 0.0
        %380 = vmatpush1.msra.mxu0 0.0
        %381 = vmatprep.subr.mxu0 0.0
        %382 = vmatpush1.msra.mxu0 0.0
        %383 = vmatprep.subr.mxu0 0.0
        %384 = vmatpush1.msra.mxu0 0.0
        %385 = vmatprep.subr.mxu0 0.0
        %386 = vmatpush1.msra.mxu0 0.0
        %387 = vmatprep.subr.mxu0 0.0
        %388 = vmatpush1.msra.mxu0 0.0
        %389 = vmatprep.subr.mxu0 0.0
        %390 = vmatpush1.msra.mxu0 0.0
        %391 = vmatprep.subr.mxu0 0.0
        %392 = vmatpush1.msra.mxu0 0.0
        %393 = vmatprep.subr.mxu0 0.0
        %394 = vmatpush1.msra.mxu0 0.0
        %395 = vmatprep.subr.mxu0 0.0
        %396 = vmatpush1.msra.mxu0 0.0
        %397 = vmatprep.subr.mxu0 0.0
        %398 = vmatpush1.msra.mxu0 0.0
        %399 = vmatprep.subr.mxu0 %v367
        %400 = vmatpush1.msra.mxu0 %v365
        %401 = vmatprep.subr.mxu0 0.0
        %402 = vmatpush2.msra.mxu0 0.0
        %403 = vmatprep.subr.mxu0 0.0
        %404 = vmatpush2.msra.mxu0 0.0
        %405 = vmatprep.subr.mxu0 0.0
        %406 = vmatpush2.msra.mxu0 0.0
        %407 = vmatprep.subr.mxu0 0.0
        %408 = vmatpush2.msra.mxu0 0.0
        %409 = vmatprep.subr.mxu0 0.0
        %410 = vmatpush2.msra.mxu0 0.0
        %411 = vmatprep.subr.mxu0 0.0
        %412 = vmatpush2.msra.mxu0 0.0
        %413 = vmatprep.subr.mxu0 0.0
        %414 = vmatpush2.msra.mxu0 0.0
        %415 = vmatprep.subr.mxu0 0.0
        %416 = vmatpush2.msra.mxu0 0.0
        %417 = vmatprep.subr.mxu0 0.0
        %418 = vmatpush2.msra.mxu0 0.0
        %419 = vmatprep.subr.mxu0 0.0
        %420 = vmatpush2.msra.mxu0 0.0
        %421 = vmatprep.subr.mxu0 0.0
        %422 = vmatpush2.msra.mxu0 0.0
        %423 = vmatprep.subr.mxu0 0.0
        %424 = vmatpush2.msra.mxu0 0.0
        %425 = vmatprep.subr.mxu0 0.0
        %426 = vmatpush2.msra.mxu0 0.0
        %427 = vmatprep.subr.mxu0 0.0
        %428 = vmatpush2.msra.mxu0 0.0
        %429 = vmatprep.subr.mxu0 0.0
        %430 = vmatpush2.msra.mxu0 0.0
        %431 = vmatprep.subr.mxu0 0.0
        %432 = vmatpush2.msra.mxu0 0.0
        %433 = vmatprep.mubr.f32.mxu0 0.0
        %434 = vmatmul.mubr.f32.gmra.mxu0 %v362
        %v435 = vpop.f32.mrf.mxu0
        %v436 = vadd.f32 %v357, %v435
        %v437 = vpop.f32.mrf.mxu0
        %v438 = vadd.f32 %v357, %v437
        %439 = vdwg.mxu0
        %vm440 = vcmask 1040384
        %v441 = vsel %vm440, %v436, -inf
        %v442 = vsel %vm440, %v438, -inf
        %v443 = vmax.f32 %v441, %v442
        %444 = vmax.xlane.f32.xlu0 %v443
        %v445 = vpop.xlane.xlu0 %444
        %v446 = vsub.f32 %v436, %v445
        %v447 = vsub.f32 %v438, %v445
        %v448 = vmul.f32 %v446, 1.442695
        %v449 = vpow.pop %v448
        %v450 = vmul.f32 %v447, 1.442695
        %v451 = vpow.pop %v450
        %v452 = vsel %vm440, %v449, 0.0
        %v453 = vsel %vm440, %v451, 0.0
        %v454 = vadd.f32 %v452, %v453
        %455 = vadd.xlane.f32.xlu0 %v454
        %v456 = vpop.xlane.xlu0 %455
        %v457 = vlaneseq
        %v458 = vshrl.u32 %v457, 7
        %v459 = vsub.s32 0, %v458
        %v460 = vrot.slane %v449, %v459
        %v461 = vlaneseq
        %v462 = vshrl.u32 %v461, 7
        %v463 = vsub.s32 0, %v462
        %v464 = vrot.slane %v451, %v463
        %v467 = vcombine.low %v460, %v464
        %v469 = vmul.f32 %v347, %v467
        %v471 = vcombine.high %v469, %v469
        %v473 = vsel %vm364, %v469, 0.0
        %v474 = vsel %vm364, %v471, 0.0
        %v475 = vadd.f32 %v473, %v474
        %476 = vadd.xlane.f32.xlu0 %v475
        %v477 = vpop.xlane.xlu0 %476
        %v478 = vlaneseq
        %v479 = vshrl.u32 %v478, 7
        %v480 = vsub.s32 0, %v479
        %v481 = vrot.slane %v456, %v480
        %v482 = vrcp.pop %v481
        %v483 = vmul.f32 %v477, %v482
        %v484 = vld [vmem:[%s3] sm:$0x3]
        %v485 = vld [vmem:[%s4] sm:$0x3]
        %v487 = vsel %vm360, %v484, 0
        %v490 = vsel %vm364, %v483, 0
        %492 = vmatprep.subr.mxu0 0.0
        %493 = vmatpush1.msra.mxu0 0.0
        %494 = vmatprep.subr.mxu0 0.0
        %495 = vmatpush1.msra.mxu0 0.0
        %496 = vmatprep.subr.mxu0 0.0
        %497 = vmatpush1.msra.mxu0 0.0
        %498 = vmatprep.subr.mxu0 0.0
        %499 = vmatpush1.msra.mxu0 0.0
        %500 = vmatprep.subr.mxu0 0.0
        %501 = vmatpush1.msra.mxu0 0.0
        %502 = vmatprep.subr.mxu0 0.0
        %503 = vmatpush1.msra.mxu0 0.0
        %504 = vmatprep.subr.mxu0 0.0
        %505 = vmatpush1.msra.mxu0 0.0
        %506 = vmatprep.subr.mxu0 0.0
        %507 = vmatpush1.msra.mxu0 0.0
        %508 = vmatprep.subr.mxu0 0.0
        %509 = vmatpush1.msra.mxu0 0.0
        %510 = vmatprep.subr.mxu0 0.0
        %511 = vmatpush1.msra.mxu0 0.0
        %512 = vmatprep.subr.mxu0 0.0
        %513 = vmatpush1.msra.mxu0 0.0
        %514 = vmatprep.subr.mxu0 0.0
        %515 = vmatpush1.msra.mxu0 0.0
        %516 = vmatprep.subr.mxu0 0.0
        %517 = vmatpush1.msra.mxu0 0.0
        %518 = vmatprep.subr.mxu0 0.0
        %519 = vmatpush1.msra.mxu0 0.0
        %520 = vmatprep.subr.mxu0 0.0
        %521 = vmatpush1.msra.mxu0 0.0
        %522 = vmatprep.subr.mxu0 0.0
        %523 = vmatpush1.msra.mxu0 %v490
        %524 = vmatprep.subr.mxu0 0.0
        %525 = vmatpush2.msra.mxu0 0.0
        %526 = vmatprep.subr.mxu0 0.0
        %527 = vmatpush2.msra.mxu0 0.0
        %528 = vmatprep.subr.mxu0 0.0
        %529 = vmatpush2.msra.mxu0 0.0
        %530 = vmatprep.subr.mxu0 0.0
        %531 = vmatpush2.msra.mxu0 0.0
        %532 = vmatprep.subr.mxu0 0.0
        %533 = vmatpush2.msra.mxu0 0.0
        %534 = vmatprep.subr.mxu0 0.0
        %535 = vmatpush2.msra.mxu0 0.0
        %536 = vmatprep.subr.mxu0 0.0
        %537 = vmatpush2.msra.mxu0 0.0
        %538 = vmatprep.subr.mxu0 0.0
        %539 = vmatpush2.msra.mxu0 0.0
        %540 = vmatprep.subr.mxu0 0.0
        %541 = vmatpush2.msra.mxu0 0.0
        %542 = vmatprep.subr.mxu0 0.0
        %543 = vmatpush2.msra.mxu0 0.0
        %544 = vmatprep.subr.mxu0 0.0
        %545 = vmatpush2.msra.mxu0 0.0
        %546 = vmatprep.subr.mxu0 0.0
        %547 = vmatpush2.msra.mxu0 0.0
        %548 = vmatprep.subr.mxu0 0.0
        %549 = vmatpush2.msra.mxu0 0.0
        %550 = vmatprep.subr.mxu0 0.0
        %551 = vmatpush2.msra.mxu0 0.0
        %552 = vmatprep.subr.mxu0 0.0
        %553 = vmatpush2.msra.mxu0 0.0
        %554 = vmatprep.subr.mxu0 0.0
        %555 = vmatpush2.msra.mxu0 0.0
        %556 = vmatprep.mubr.f32.mxu0 0.0
        %557 = vmatmul.mubr.f32.gmra.mxu0 %v487
        %v558 = vpop.f32.mrf.mxu0
        %v559 = vadd.f32 %v485, %v558
        %v560 = vpop.f32.mrf.mxu0
        %561 = vdwg.mxu0
        %vm562 = vcmask 1024
        %v563 = vsel %vm562, %v559, 0.0
        %564 = vadd.xlane.f32.xlu0 %v563
        %v565 = vpop.xlane.xlu0 %564
        %v566 = vrot.slane %v565, 4
        %v567 = vadd.f32 %v565, %v566
        %v568 = vrot.slane %v567, 2
        %v569 = vadd.f32 %v567, %v568
        %v570 = vrot.slane %v569, 1
        %v571 = vadd.f32 %v569, %v570
        %s572 = vtos %v571
        %v573 = vstv %s572
        %v574 = vrcp.pop 2.0
        %v575 = vmul.f32 %v573, %v574
        %v576 = vsub.f32 %v559, %v575
        %v577 = vmul.f32 %v576, %v576
        %v578 = vsel %vm562, %v577, 0.0
        %579 = vadd.xlane.f32.xlu0 %v578
        %v580 = vpop.xlane.xlu0 %579
        %v581 = vrot.slane %v580, 4
        %v582 = vadd.f32 %v580, %v581
        %v583 = vrot.slane %v582, 2
        %v584 = vadd.f32 %v582, %v583
        %v585 = vrot.slane %v584, 1
        %v586 = vadd.f32 %v584, %v585
        %s587 = vtos %v586
        %v588 = vstv %s587
        %v589 = vmul.f32 %v588, %v574
        %v590 = vadd.f32 %v589, 1e-05
        %v591 = vrsqrt.pop %v590
        %v592 = vmul.f32 %v590, %v591
        %vm593 = vcmp.eq.f32.partialorder %v590, inf
        %v594 = vsel %vm593, %v590, %v592
        %vm595 = vcmp.eq.f32.partialorder %v590, 0.0
        %v596 = vand.u32 %v590, 2147483648
        %v597 = vsel %vm595, %v596, %v594
        %v598 = vrcp.pop %v597
        %v599 = vmul.f32 %v576, %v598
        %v600 = vld [vmem:[%s5] sm:$0x3]
        %v601 = vmul.f32 %v599, %v600
        %v602 = vld [vmem:[%s6] sm:$0x3]
        %v603 = vadd.f32 %v601, %v602
        %v604 = vmax.f32 %v603, 0.0
        %v605 = vld [vmem:[%s7] sm:$0xf]
        %v606 = vld [vmem:[%s8] sm:$0xf]
        %vm607 = vcmask 15360
        %v609 = vsel %vm607, %v605, 0
        %vm611 = vcmask 1041408
        %v613 = vsel %vm611, %v604, 0
        %615 = vmatprep.subr.mxu0 0.0
        %616 = vmatpush1.msra.mxu0 0.0
        %617 = vmatprep.subr.mxu0 0.0
        %618 = vmatpush1.msra.mxu0 0.0
        %619 = vmatprep.subr.mxu0 0.0
        %620 = vmatpush1.msra.mxu0 0.0
        %621 = vmatprep.subr.mxu0 0.0
        %622 = vmatpush1.msra.mxu0 0.0
        %623 = vmatprep.subr.mxu0 0.0
        %624 = vmatpush1.msra.mxu0 0.0
        %625 = vmatprep.subr.mxu0 0.0
        %626 = vmatpush1.msra.mxu0 0.0
        %627 = vmatprep.subr.mxu0 0.0
        %628 = vmatpush1.msra.mxu0 0.0
        %629 = vmatprep.subr.mxu0 0.0
        %630 = vmatpush1.msra.mxu0 0.0
        %631 = vmatprep.subr.mxu0 0.0
        %632 = vmatpush1.msra.mxu0 0.0
        %633 = vmatprep.subr.mxu0 0.0
        %634 = vmatpush1.msra.mxu0 0.0
        %635 = vmatprep.subr.mxu0 0.0
        %636 = vmatpush1.msra.mxu0 0.0
        %637 = vmatprep.subr.mxu0 0.0
        %638 = vmatpush1.msra.mxu0 0.0
        %639 = vmatprep.subr.mxu0 0.0
        %640 = vmatpush1.msra.mxu0 0.0
        %641 = vmatprep.subr.mxu0 0.0
        %642 = vmatpush1.msra.mxu0 0.0
        %643 = vmatprep.subr.mxu0 0.0
        %644 = vmatpush1.msra.mxu0 0.0
        %645 = vmatprep.subr.mxu0 0.0
        %646 = vmatpush1.msra.mxu0 %v613
        %647 = vmatprep.subr.mxu0 0.0
        %648 = vmatpush2.msra.mxu0 0.0
        %649 = vmatprep.subr.mxu0 0.0
        %650 = vmatpush2.msra.mxu0 0.0
        %651 = vmatprep.subr.mxu0 0.0
        %652 = vmatpush2.msra.mxu0 0.0
        %653 = vmatprep.subr.mxu0 0.0
        %654 = vmatpush2.msra.mxu0 0.0
        %655 = vmatprep.subr.mxu0 0.0
        %656 = vmatpush2.msra.mxu0 0.0
        %657 = vmatprep.subr.mxu0 0.0
        %658 = vmatpush2.msra.mxu0 0.0
        %659 = vmatprep.subr.mxu0 0.0
        %660 = vmatpush2.msra.mxu0 0.0
        %661 = vmatprep.subr.mxu0 0.0
        %662 = vmatpush2.msra.mxu0 0.0
        %663 = vmatprep.subr.mxu0 0.0
        %664 = vmatpush2.msra.mxu0 0.0
        %665 = vmatprep.subr.mxu0 0.0
        %666 = vmatpush2.msra.mxu0 0.0
        %667 = vmatprep.subr.mxu0 0.0
        %668 = vmatpush2.msra.mxu0 0.0
        %669 = vmatprep.subr.mxu0 0.0
        %670 = vmatpush2.msra.mxu0 0.0
        %671 = vmatprep.subr.mxu0 0.0
        %672 = vmatpush2.msra.mxu0 0.0
        %673 = vmatprep.subr.mxu0 0.0
        %674 = vmatpush2.msra.mxu0 0.0
        %675 = vmatprep.subr.mxu0 0.0
        %676 = vmatpush2.msra.mxu0 0.0
        %677 = vmatprep.subr.mxu0 0.0
        %678 = vmatpush2.msra.mxu0 0.0
        %679 = vmatprep.mubr.f32.mxu0 0.0
        %680 = vmatmul.mubr.f32.gmra.mxu0 %v609
        %v681 = vpop.f32.mrf.mxu0
        %v682 = vadd.f32 %v606, %v681
        %v683 = vpop.f32.mrf.mxu0
        %684 = vdwg.mxu0
        %686 = vset.pattern.permute.xlu0 0
        %687 = vperm.xlu0 %686, %v682
        %v688 = vpop.permute.xlu0 %687
        %v690 = vunpack.c.l.s4 839922192
        %v691 = vunpack.c.0.s8 %v690
        %v692 = vlaneseq
        %v693 = vshrl.u32 %v692, 7
        %v694 = vsub.s32 %v691, %v693
        %v695 = vrot.slane %v688, %v694
        %v697 = vadd.f32 %v347, %v695
        %698 = vst [vmem:[%s340] sm:$0xff] %v697
        %s699 = sand.u32 %s228, 1
        %s700 = scalar_lea.sflag [#allocation5], %s699
        %s701 = sand.u32 %s228, 1
        %s702 = smul.addr %s701, 8
        %s703 = scalar_lea.vmem [#allocation6], %s702
        // Predicated region
        $region61: #{tpu_custom_call.1} parent=55 // pred_check
          %p704 = pneg %p238
        $region62: #{tpu_custom_call.1} parent=55 // pred_check_branch
          %706 = sbr.rel (%p704) target = $region64
        $region63: #{tpu_custom_call.1} parent=55 // pred_region
          %s708 = ssub.s32 128, 128
          %709 = vsyncadd %s700, %s708
          %s710 = smul.addr %s26, 2
          %s711 = smul.addr %s710, 64
          %s712 = scalar_lea.hbm %s9, %s711
          %s714 = sshll.u32 %s703, 4
          %s715 = int_to_ptr.vmem [resolvable:$true] %s714
          %717 = dma.vmem_to_hbm [thread:$0]  %s715, 128, %s712, %s700
        $region64: #{tpu_custom_call.1} parent=55 // pred_fallthru
          _
      $region56: #{tpu_custom_call.1} parent=5 // pred_fallthru
        _
      %p718 = scmp.le.s32.totalorder 2, %s21
      // Predicated region
      $region65: #{tpu_custom_call.1} parent=5 // pred_check
        %p719 = pneg %p718
      $region66: #{tpu_custom_call.1} parent=5 // pred_check_branch
        %721 = sbr.rel (%p719) target = $region68
      $region67: #{tpu_custom_call.1} parent=5 // pred_region
        %s722 = ssub.s32 %s21, 2
        // Predicated region
        $region69: #{tpu_custom_call.1} parent=67 // pred_check
          %p723 = pneg %p244
        $region70: #{tpu_custom_call.1} parent=67 // pred_check_branch
          %725 = sbr.rel (%p723) target = $region72
        $region71: #{tpu_custom_call.1} parent=67 // pred_region
          %s726 = sand.u32 %s229, 1
          %s727 = scalar_lea.sflag [#allocation5], %s726
          %s728 = sand.u32 %s229, 1
          %s729 = smul.addr %s728, 8
          %s730 = scalar_lea.vmem [#allocation6], %s729
          %731 = dma.done %s727, 128
        $region72: #{tpu_custom_call.1} parent=67 // pred_fallthru
          _
      $region68: #{tpu_custom_call.1} parent=5 // pred_fallthru
        _
    $region6: #{tpu_custom_call.1} parent=1 // loop_footer
      %s25 = sadd.s32 1, %s21
    $region7: #{tpu_custom_call.1} parent=1 // loop_footer_branch
      %20 = sbr.rel target = $region3
    $region8: #{tpu_custom_call.1} parent=1 // loop_exit
      _
    %732 = vsyncpa [#allocation4], 1
    %s733 = scalar_lea.sflag [#allocation4], 1
    %734 = vsyncpa %s733, 1
    %735 = vsyncpa [#allocation5], 1
    %s736 = scalar_lea.sflag [#allocation5], 1
    %737 = vsyncpa %s736, 1

</llo_original>
